<compile_context>
chip_gen: v7x
topology: tpu7x:2x2x1
jax: 0.10.0
libtpu: 0.0.40
codegen_flags: <defaults>
</compile_context>

<pallas_src>
import functools

import numpy as np
import jax
import jax.numpy as jnp
from jax import lax
from jax.experimental import pallas as pl
from jax.experimental.pallas import tpu as pltpu


def _make_generator_kernel(k_minus_1):
    """Fused kernel: conv+ReLU, norms, noise rescale, real + fake rotations."""

    def kernel(th_ref, dth_ref,                    # SMEM: thetas[B], delta_thetas[(k-1)*B]
               p_ref, w_ref, bias_ref, n_ref, fn_ref,   # VMEM inputs
               a_ref, xr_ref, xi_ref, fxr_ref, fxi_ref):  # VMEM outputs
        bi = pl.program_id(0)
        nb = pl.num_programs(0)

        # ---- encoding layer: 3x3 conv as im2col matmul + bias + ReLU ----
        # w_ref: [C, C*9], p_ref: [C*9, H*W] -> a: [C, H*W]  (lane-dense output)
        a = jnp.dot(w_ref[...], p_ref[...], preferred_element_type=jnp.float32)
        a = jnp.maximum(a + bias_ref[...], 0.0)
        a_ref[...] = a

        # ---- per-sample magnitude: full L2 over (C, H, W) ----
        # (== torch L2-of-per-channel-L2 used by the reference)
        a_sq = jnp.sum(jnp.sum(a * a, axis=1, keepdims=True), axis=0, keepdims=True)
        a_mag = jnp.sqrt(a_sq)                                       # (1, 1)

        # ---- real feature rotation: x = (a + i*b) * exp(i*theta) ----
        theta = th_ref[bi] + jnp.zeros((1, 1), dtype=jnp.float32)    # SMEM scalar -> splat
        c = jnp.cos(theta)
        s = jnp.sin(theta)

        noise = n_ref[...]                                           # [C, H*W]
        n_sq = jnp.sum(jnp.sum(noise * noise, axis=1, keepdims=True),
                       axis=0, keepdims=True)
        # b = noise / ||noise|| * ||a||   (rsqrt -> EUP; no vector divide)
        bn = noise * (lax.rsqrt(n_sq) * a_mag)

        xr_ref[...] = a * c - bn * s
        xi_ref[...] = a * s + bn * c

        # ---- k-1 fake features: reuse `a` and a_mag already in VMEM ----
        for j in range(k_minus_1):
            fnoise = fn_ref[j]                                       # [C, H*W]
            fn_sq = jnp.sum(jnp.sum(fnoise * fnoise, axis=1, keepdims=True),
                            axis=0, keepdims=True)
            fbn = fnoise * (lax.rsqrt(fn_sq) * a_mag)

            dth = dth_ref[j * nb + bi] + jnp.zeros((1, 1), dtype=jnp.float32)
            fc = jnp.cos(dth)
            fs = jnp.sin(dth)

            fxr_ref[j] = a * fc - fbn * fs
            fxi_ref[j] = a * fs + fbn * fc

    return kernel


@functools.partial(jax.jit, static_argnames=("k",))
def generator_forward(image_batch, conv_w, conv_b, key, k=2):
    assert k >= 2, "k (anonymity level) must be >= 2"
    B, C, H, W = image_batch.shape
    Cout = conv_w.shape[0]
    HW = H * W
    K = C * 9
    kf = k - 1

    # Randomness (torch.normal / .uniform_ equivalents) generated in jitted glue.
    kb, kt, kfb, kdt = jax.random.split(key, 4)
    b_noise = jax.random.normal(kb, (B, Cout, HW), jnp.float32)
    thetas = jax.random.uniform(kt, (B,), jnp.float32,
                                minval=0.0, maxval=2.0 * np.pi)
    fake_b_noise = jax.random.normal(kfb, (kf, B, Cout, HW), jnp.float32)
    delta_thetas = jax.random.uniform(kdt, (kf * B,), jnp.float32,
                                      minval=0.0, maxval=np.pi)

    # im2col, tap-major layout [B, C*9, H*W]; the flatten is a pure contiguous
    # reshape of the [B, C, 9, H, W] stack -- no transpose/relayout pass.
    xp = jnp.pad(image_batch, ((0, 0), (0, 0), (1, 1), (1, 1)))
    patches_t = jnp.stack(
        [xp[:, :, dh:dh + H, dw:dw + W] for dh in range(3) for dw in range(3)],
        axis=2).reshape(B, K, HW)
    wmat = conv_w.reshape(Cout, K)                 # row order (cin, kh, kw) matches patches
    bias = conv_b.reshape(Cout, 1)

    smem_spec = pl.BlockSpec(memory_space=pltpu.MemorySpace.SMEM)
    row_spec = pl.BlockSpec((None, Cout, HW), lambda b: (b, 0, 0))
    fake_spec = pl.BlockSpec((kf, None, Cout, HW), lambda b: (0, b, 0, 0))

    out_shapes = (
        jax.ShapeDtypeStruct((B, Cout, HW), jnp.float32),       # a
        jax.ShapeDtypeStruct((B, Cout, HW), jnp.float32),       # Re(x)
        jax.ShapeDtypeStruct((B, Cout, HW), jnp.float32),       # Im(x)
        jax.ShapeDtypeStruct((kf, B, Cout, HW), jnp.float32),   # Re(fake_x)
        jax.ShapeDtypeStruct((kf, B, Cout, HW), jnp.float32),   # Im(fake_x)
    )

    a_rows, xr, xi, fxr, fxi = pl.pallas_call(
        _make_generator_kernel(kf),
        grid=(B,),
        in_specs=[
            smem_spec,                                           # thetas  (SMEM)
            smem_spec,                                           # delta_thetas (SMEM)
            pl.BlockSpec((None, K, HW), lambda b: (b, 0, 0)),    # patches^T per sample
            pl.BlockSpec((Cout, K), lambda b: (0, 0)),           # weight matrix (resident)
            pl.BlockSpec((Cout, 1), lambda b: (0, 0)),           # bias column (resident)
            row_spec,                                            # real noise per sample
            fake_spec,                                           # fake noise per sample
        ],
        out_specs=[row_spec, row_spec, row_spec, fake_spec, fake_spec],
        out_shape=out_shapes,
        compiler_params=pltpu.CompilerParams(
            dimension_semantics=("parallel",)),
    )(thetas, delta_thetas, patches_t, wmat, bias, b_noise, fake_b_noise)

    a = a_rows.reshape(B, Cout, H, W)
    x = (xr + 1j * xi).reshape(B, Cout, H, W)                    # complex64
    fake_x = (fxr + 1j * fxi).reshape(kf * B, Cout, H, W)        # complex64, torch cat order
    return (a, x, thetas.reshape(B, 1, 1, 1),
            fake_x, delta_thetas.reshape(kf * B, 1, 1, 1))


if __name__ == "__main__":
    key = jax.random.PRNGKey(0)
    k_img, k_param, k_noise = jax.random.split(key, 3)

    B, C, H, W = 2, 4, 16, 16
    k_anon = 2

    image_batch = jax.random.normal(k_img, (B, C, H, W), jnp.float32)

    # Synthetic encoding-layer parameters (PyTorch-style uniform init).
    kw_key, kb_key = jax.random.split(k_param)
    fan_in = C * 3 * 3
    bound = 1.0 / np.sqrt(fan_in)
    conv_w = jax.random.uniform(kw_key, (C, C, 3, 3), jnp.float32,
                                minval=-bound, maxval=bound)
    conv_b = jax.random.uniform(kb_key, (C,), jnp.float32,
                                minval=-bound, maxval=bound)

    outs = generator_forward(image_batch, conv_w, conv_b, k_noise, k=k_anon)
    outs = jax.block_until_ready(outs)
    a, x, thetas, fake_x, delta_thetas = outs

    # ---- shape / dtype contract ----
    assert a.shape == (B, C, H, W) and a.dtype == jnp.float32
    assert x.shape == (B, C, H, W) and x.dtype == jnp.complex64
    assert thetas.shape == (B, 1, 1, 1)
    assert fake_x.shape == ((k_anon - 1) * B, C, H, W) and fake_x.dtype == jnp.complex64
    assert delta_thetas.shape == ((k_anon - 1) * B, 1, 1, 1)

    # ---- correctness: conv+ReLU against lax.conv reference ----
    a_ref = jax.lax.conv_general_dilated(
        image_batch, conv_w, window_strides=(1, 1), padding="SAME",
        dimension_numbers=("NCHW", "OIHW", "NCHW"))
    a_ref = jnp.maximum(a_ref + conv_b.reshape(1, C, 1, 1), 0.0)
    np.testing.assert_allclose(np.asarray(a), np.asarray(a_ref), rtol=1e-5, atol=1e-5)

    # ---- correctness: rotation / magnitude semantics ----
    rot_back = x * jnp.exp(-1j * thetas)                 # == a + i*b
    np.testing.assert_allclose(np.asarray(jnp.real(rot_back)), np.asarray(a),
                               rtol=1e-4, atol=1e-4)
    a_norms = jnp.sqrt(jnp.sum(a.reshape(B, -1) ** 2, axis=1))
    b_norms = jnp.sqrt(jnp.sum(jnp.imag(rot_back).reshape(B, -1) ** 2, axis=1))
    np.testing.assert_allclose(np.asarray(b_norms), np.asarray(a_norms), rtol=1e-4)

    fake_rot_back = fake_x * jnp.exp(-1j * delta_thetas)
    fake_a_expect = jnp.concatenate([a] * (k_anon - 1), axis=0)
    np.testing.assert_allclose(np.asarray(jnp.real(fake_rot_back)),
                               np.asarray(fake_a_expect), rtol=1e-4, atol=1e-4)
    fb_norms = jnp.sqrt(jnp.sum(jnp.imag(fake_rot_back).reshape((k_anon - 1) * B, -1) ** 2,
                                axis=1))
    np.testing.assert_allclose(np.asarray(fb_norms),
                               np.asarray(jnp.tile(a_norms, k_anon - 1)), rtol=1e-4)

    assert bool(jnp.all(jnp.isfinite(jnp.abs(x)))) and bool(jnp.all(jnp.isfinite(jnp.abs(fake_x))))

    print("KERNEL_OK")
</pallas_src>

<mosaic_0001>
module attributes {stable_mosaic.version = 11 : i64} {
  func.func @kernel(%arg0: i32, %arg1: memref<2xf32, #tpu.memory_space<smem>>, %arg2: memref<2xf32, #tpu.memory_space<smem>>, %arg3: memref<1x36x256xf32, #tpu.memory_space<vmem>>, %arg4: memref<4x36xf32, #tpu.memory_space<vmem>>, %arg5: memref<4x1xf32, #tpu.memory_space<vmem>>, %arg6: memref<1x4x256xf32, #tpu.memory_space<vmem>>, %arg7: memref<1x1x4x256xf32, #tpu.memory_space<vmem>>, %arg8: memref<1x4x256xf32, #tpu.memory_space<vmem>>, %arg9: memref<1x4x256xf32, #tpu.memory_space<vmem>>, %arg10: memref<1x4x256xf32, #tpu.memory_space<vmem>>, %arg11: memref<1x1x4x256xf32, #tpu.memory_space<vmem>>, %arg12: memref<1x1x4x256xf32, #tpu.memory_space<vmem>>) attributes {dimension_semantics = [#tpu.dimension_semantics<parallel>], iteration_bounds = array<i64: 2>, scalar_prefetch = 0 : i64, scratch_operands = 0 : i64, tpu.core_type = #tpu.core_type<tc>, window_params = [{transform_indices = @transform_0, window_bounds = array<i64: 2>}, {transform_indices = @transform_1, window_bounds = array<i64: 2>}, {transform_indices = @transform_2, window_bounds = array<i64: 1, 36, 256>}, {pipeline_mode = #tpu.pipeline_mode<synchronous>, transform_indices = @transform_3, window_bounds = array<i64: 4, 36>}, {pipeline_mode = #tpu.pipeline_mode<synchronous>, transform_indices = @transform_4, window_bounds = array<i64: 4, 1>}, {transform_indices = @transform_5, window_bounds = array<i64: 1, 4, 256>}, {transform_indices = @transform_6, window_bounds = array<i64: 1, 1, 4, 256>}, {transform_indices = @transform_7, window_bounds = array<i64: 1, 4, 256>}, {transform_indices = @transform_8, window_bounds = array<i64: 1, 4, 256>}, {transform_indices = @transform_9, window_bounds = array<i64: 1, 4, 256>}, {transform_indices = @transform_10, window_bounds = array<i64: 1, 1, 4, 256>}, {transform_indices = @transform_11, window_bounds = array<i64: 1, 1, 4, 256>}]} {
    %c0 = arith.constant 0 : index
    %c0_0 = arith.constant 0 : index
    %0 = vector.load %arg4[%c0, %c0_0] : memref<4x36xf32, #tpu.memory_space<vmem>>, vector<4x36xf32>
    %c0_1 = arith.constant 0 : index
    %c0_2 = arith.constant 0 : index
    %c0_3 = arith.constant 0 : index
    %1 = vector.load %arg3[%c0_1, %c0_2, %c0_3] : memref<1x36x256xf32, #tpu.memory_space<vmem>>, vector<1x36x256xf32>
    %2 = vector.shape_cast %1 : vector<1x36x256xf32> to vector<36x256xf32>
    %cst = arith.constant dense<0.000000e+00> : vector<4x256xf32>
    %3 = tpu.matmul %0, %2, %cst {dimension_numbers = #tpu.dot_dimension_numbers<[1], [0], [0], [1], [0, 0, 1, 1], [], []>} : vector<4x36xf32>, vector<36x256xf32>, vector<4x256xf32> -> vector<4x256xf32>
    %c0_4 = arith.constant 0 : index
    %c0_5 = arith.constant 0 : index
    %4 = vector.load %arg5[%c0_4, %c0_5] : memref<4x1xf32, #tpu.memory_space<vmem>>, vector<4x1xf32>
    %5 = vector.broadcast %4 : vector<4x1xf32> to vector<4x256xf32>
    %6 = arith.addf %3, %5 : vector<4x256xf32>
    %cst_6 = arith.constant 0.000000e+00 : f32
    %7 = vector.broadcast %cst_6 : f32 to vector<4x256xf32>
    %8 = arith.maximumf %6, %7 : vector<4x256xf32>
    %c0_7 = arith.constant 0 : index
    %c0_8 = arith.constant 0 : index
    %c0_9 = arith.constant 0 : index
    %9 = vector.load %arg8[%c0_7, %c0_8, %c0_9] : memref<1x4x256xf32, #tpu.memory_space<vmem>>, vector<1x4x256xf32>
    %10 = vector.shape_cast %9 : vector<1x4x256xf32> to vector<4x256xf32>
    %11 = vector.shape_cast %8 : vector<4x256xf32> to vector<1x4x256xf32>
    tpu.vector_store %arg8[%c0_7, %c0_8, %c0_9], %11 {strides = array<i32>} : memref<1x4x256xf32, #tpu.memory_space<vmem>>, vector<1x4x256xf32>,
    %12 = arith.mulf %8, %8 : vector<4x256xf32>
    %cst_10 = arith.constant dense<0.000000e+00> : vector<4xf32>
    %13 = vector.multi_reduction <add>, %12, %cst_10 [1] : vector<4x256xf32> to vector<4xf32>
    %14 = vector.shape_cast %13 : vector<4xf32> to vector<4x1xf32>
    %cst_11 = arith.constant dense<0.000000e+00> : vector<1xf32>
    %15 = vector.multi_reduction <add>, %14, %cst_11 [0] : vector<4x1xf32> to vector<1xf32>
    %16 = vector.shape_cast %15 : vector<1xf32> to vector<1x1xf32>
    %17 = math.sqrt %16 : vector<1x1xf32>
    %18 = arith.index_cast %arg0 : i32 to index
    %19 = memref.load %arg1[%18] : memref<2xf32, #tpu.memory_space<smem>>
    %cst_12 = arith.constant 0.000000e+00 : f32
    %20 = vector.broadcast %cst_12 : f32 to vector<1x1xf32>
    %21 = vector.broadcast %19 : f32 to vector<1x1xf32>
    %22 = arith.addf %21, %20 : vector<1x1xf32>
    %23 = math.cos %22 : vector<1x1xf32>
    %24 = math.sin %22 : vector<1x1xf32>
    %c0_13 = arith.constant 0 : index
    %c0_14 = arith.constant 0 : index
    %c0_15 = arith.constant 0 : index
    %25 = vector.load %arg6[%c0_13, %c0_14, %c0_15] : memref<1x4x256xf32, #tpu.memory_space<vmem>>, vector<1x4x256xf32>
    %26 = vector.shape_cast %25 : vector<1x4x256xf32> to vector<4x256xf32>
    %27 = arith.mulf %26, %26 : vector<4x256xf32>
    %cst_16 = arith.constant dense<0.000000e+00> : vector<4xf32>
    %28 = vector.multi_reduction <add>, %27, %cst_16 [1] : vector<4x256xf32> to vector<4xf32>
    %29 = vector.shape_cast %28 : vector<4xf32> to vector<4x1xf32>
    %cst_17 = arith.constant dense<0.000000e+00> : vector<1xf32>
    %30 = vector.multi_reduction <add>, %29, %cst_17 [0] : vector<4x1xf32> to vector<1xf32>
    %31 = vector.shape_cast %30 : vector<1xf32> to vector<1x1xf32>
    %32 = math.rsqrt %31 : vector<1x1xf32>
    %33 = arith.mulf %32, %17 : vector<1x1xf32>
    %34 = vector.broadcast %33 : vector<1x1xf32> to vector<4x256xf32>
    %35 = arith.mulf %26, %34 : vector<4x256xf32>
    %36 = vector.broadcast %23 : vector<1x1xf32> to vector<4x256xf32>
    %37 = arith.mulf %8, %36 : vector<4x256xf32>
    %38 = vector.broadcast %24 : vector<1x1xf32> to vector<4x256xf32>
    %39 = arith.mulf %35, %38 : vector<4x256xf32>
    %40 = arith.subf %37, %39 : vector<4x256xf32>
    %c0_18 = arith.constant 0 : index
    %c0_19 = arith.constant 0 : index
    %c0_20 = arith.constant 0 : index
    %41 = vector.load %arg9[%c0_18, %c0_19, %c0_20] : memref<1x4x256xf32, #tpu.memory_space<vmem>>, vector<1x4x256xf32>
    %42 = vector.shape_cast %41 : vector<1x4x256xf32> to vector<4x256xf32>
    %43 = vector.shape_cast %40 : vector<4x256xf32> to vector<1x4x256xf32>
    tpu.vector_store %arg9[%c0_18, %c0_19, %c0_20], %43 {strides = array<i32>} : memref<1x4x256xf32, #tpu.memory_space<vmem>>, vector<1x4x256xf32>,
    %44 = vector.broadcast %24 : vector<1x1xf32> to vector<4x256xf32>
    %45 = arith.mulf %8, %44 : vector<4x256xf32>
    %46 = vector.broadcast %23 : vector<1x1xf32> to vector<4x256xf32>
    %47 = arith.mulf %35, %46 : vector<4x256xf32>
    %48 = arith.addf %45, %47 : vector<4x256xf32>
    %c0_21 = arith.constant 0 : index
    %c0_22 = arith.constant 0 : index
    %c0_23 = arith.constant 0 : index
    %49 = vector.load %arg10[%c0_21, %c0_22, %c0_23] : memref<1x4x256xf32, #tpu.memory_space<vmem>>, vector<1x4x256xf32>
    %50 = vector.shape_cast %49 : vector<1x4x256xf32> to vector<4x256xf32>
    %51 = vector.shape_cast %48 : vector<4x256xf32> to vector<1x4x256xf32>
    tpu.vector_store %arg10[%c0_21, %c0_22, %c0_23], %51 {strides = array<i32>} : memref<1x4x256xf32, #tpu.memory_space<vmem>>, vector<1x4x256xf32>,
    %c0_24 = arith.constant 0 : index
    %c0_25 = arith.constant 0 : index
    %c0_26 = arith.constant 0 : index
    %c0_27 = arith.constant 0 : index
    %52 = vector.load %arg7[%c0_24, %c0_25, %c0_26, %c0_27] : memref<1x1x4x256xf32, #tpu.memory_space<vmem>>, vector<1x1x4x256xf32>
    %53 = vector.shape_cast %52 : vector<1x1x4x256xf32> to vector<4x256xf32>
    %54 = arith.mulf %53, %53 : vector<4x256xf32>
    %cst_28 = arith.constant dense<0.000000e+00> : vector<4xf32>
    %55 = vector.multi_reduction <add>, %54, %cst_28 [1] : vector<4x256xf32> to vector<4xf32>
    %56 = vector.shape_cast %55 : vector<4xf32> to vector<4x1xf32>
    %cst_29 = arith.constant dense<0.000000e+00> : vector<1xf32>
    %57 = vector.multi_reduction <add>, %56, %cst_29 [0] : vector<4x1xf32> to vector<1xf32>
    %58 = vector.shape_cast %57 : vector<1xf32> to vector<1x1xf32>
    %59 = math.rsqrt %58 : vector<1x1xf32>
    %60 = arith.mulf %59, %17 : vector<1x1xf32>
    %61 = vector.broadcast %60 : vector<1x1xf32> to vector<4x256xf32>
    %62 = arith.mulf %53, %61 : vector<4x256xf32>
    %c0_i32 = arith.constant 0 : i32
    %63 = arith.addi %c0_i32, %arg0 : i32
    %64 = arith.index_cast %63 : i32 to index
    %65 = memref.load %arg2[%64] : memref<2xf32, #tpu.memory_space<smem>>
    %cst_30 = arith.constant 0.000000e+00 : f32
    %66 = vector.broadcast %cst_30 : f32 to vector<1x1xf32>
    %67 = vector.broadcast %65 : f32 to vector<1x1xf32>
    %68 = arith.addf %67, %66 : vector<1x1xf32>
    %69 = math.cos %68 : vector<1x1xf32>
    %70 = math.sin %68 : vector<1x1xf32>
    %71 = vector.broadcast %69 : vector<1x1xf32> to vector<4x256xf32>
    %72 = arith.mulf %8, %71 : vector<4x256xf32>
    %73 = vector.broadcast %70 : vector<1x1xf32> to vector<4x256xf32>
    %74 = arith.mulf %62, %73 : vector<4x256xf32>
    %75 = arith.subf %72, %74 : vector<4x256xf32>
    %c0_31 = arith.constant 0 : index
    %c0_32 = arith.constant 0 : index
    %c0_33 = arith.constant 0 : index
    %c0_34 = arith.constant 0 : index
    %76 = vector.load %arg11[%c0_31, %c0_32, %c0_33, %c0_34] : memref<1x1x4x256xf32, #tpu.memory_space<vmem>>, vector<1x1x4x256xf32>
    %77 = vector.shape_cast %76 : vector<1x1x4x256xf32> to vector<4x256xf32>
    %78 = vector.shape_cast %75 : vector<4x256xf32> to vector<1x1x4x256xf32>
    tpu.vector_store %arg11[%c0_31, %c0_32, %c0_33, %c0_34], %78 {strides = array<i32>} : memref<1x1x4x256xf32, #tpu.memory_space<vmem>>, vector<1x1x4x256xf32>,
    %79 = vector.broadcast %70 : vector<1x1xf32> to vector<4x256xf32>
    %80 = arith.mulf %8, %79 : vector<4x256xf32>
    %81 = vector.broadcast %69 : vector<1x1xf32> to vector<4x256xf32>
    %82 = arith.mulf %62, %81 : vector<4x256xf32>
    %83 = arith.addf %80, %82 : vector<4x256xf32>
    %c0_35 = arith.constant 0 : index
    %c0_36 = arith.constant 0 : index
    %c0_37 = arith.constant 0 : index
    %c0_38 = arith.constant 0 : index
    %84 = vector.load %arg12[%c0_35, %c0_36, %c0_37, %c0_38] : memref<1x1x4x256xf32, #tpu.memory_space<vmem>>, vector<1x1x4x256xf32>
    %85 = vector.shape_cast %84 : vector<1x1x4x256xf32> to vector<4x256xf32>
    %86 = vector.shape_cast %83 : vector<4x256xf32> to vector<1x1x4x256xf32>
    tpu.vector_store %arg12[%c0_35, %c0_36, %c0_37, %c0_38], %86 {strides = array<i32>} : memref<1x1x4x256xf32, #tpu.memory_space<vmem>>, vector<1x1x4x256xf32>,
    return
  }
  func.func @transform_0(%arg0: i32) -> i32 {
    %c0_i32 = arith.constant 0 : i32
    %c0_i32_0 = arith.constant 0 : i32
    return %c0_i32 : i32
  }
  func.func @transform_1(%arg0: i32) -> i32 {
    %c0_i32 = arith.constant 0 : i32
    %c0_i32_0 = arith.constant 0 : i32
    return %c0_i32 : i32
  }
  func.func @transform_2(%arg0: i32) -> (i32, i32, i32) {
    %c0_i32 = arith.constant 0 : i32
    %c0_i32_0 = arith.constant 0 : i32
    %c0_i32_1 = arith.constant 0 : i32
    return %arg0, %c0_i32, %c0_i32_0 : i32, i32, i32
  }
  func.func @transform_3(%arg0: i32) -> (i32, i32) {
    %c0_i32 = arith.constant 0 : i32
    %c0_i32_0 = arith.constant 0 : i32
    %c0_i32_1 = arith.constant 0 : i32
    return %c0_i32, %c0_i32_0 : i32, i32
  }
  func.func @transform_4(%arg0: i32) -> (i32, i32) {
    %c0_i32 = arith.constant 0 : i32
    %c0_i32_0 = arith.constant 0 : i32
    %c0_i32_1 = arith.constant 0 : i32
    return %c0_i32, %c0_i32_0 : i32, i32
  }
  func.func @transform_5(%arg0: i32) -> (i32, i32, i32) {
    %c0_i32 = arith.constant 0 : i32
    %c0_i32_0 = arith.constant 0 : i32
    %c0_i32_1 = arith.constant 0 : i32
    return %arg0, %c0_i32, %c0_i32_0 : i32, i32, i32
  }
  func.func @transform_6(%arg0: i32) -> (i32, i32, i32, i32) {
    %c0_i32 = arith.constant 0 : i32
    %c0_i32_0 = arith.constant 0 : i32
    %c0_i32_1 = arith.constant 0 : i32
    %c0_i32_2 = arith.constant 0 : i32
    return %c0_i32, %arg0, %c0_i32_0, %c0_i32_1 : i32, i32, i32, i32
  }
  func.func @transform_7(%arg0: i32) -> (i32, i32, i32) {
    %c0_i32 = arith.constant 0 : i32
    %c0_i32_0 = arith.constant 0 : i32
    %c0_i32_1 = arith.constant 0 : i32
    return %arg0, %c0_i32, %c0_i32_0 : i32, i32, i32
  }
  func.func @transform_8(%arg0: i32) -> (i32, i32, i32) {
    %c0_i32 = arith.constant 0 : i32
    %c0_i32_0 = arith.constant 0 : i32
    %c0_i32_1 = arith.constant 0 : i32
    return %arg0, %c0_i32, %c0_i32_0 : i32, i32, i32
  }
  func.func @transform_9(%arg0: i32) -> (i32, i32, i32) {
    %c0_i32 = arith.constant 0 : i32
    %c0_i32_0 = arith.constant 0 : i32
    %c0_i32_1 = arith.constant 0 : i32
    return %arg0, %c0_i32, %c0_i32_0 : i32, i32, i32
  }
  func.func @transform_10(%arg0: i32) -> (i32, i32, i32, i32) {
    %c0_i32 = arith.constant 0 : i32
    %c0_i32_0 = arith.constant 0 : i32
    %c0_i32_1 = arith.constant 0 : i32
    %c0_i32_2 = arith.constant 0 : i32
    return %c0_i32, %arg0, %c0_i32_0, %c0_i32_1 : i32, i32, i32, i32
  }
  func.func @transform_11(%arg0: i32) -> (i32, i32, i32, i32) {
    %c0_i32 = arith.constant 0 : i32
    %c0_i32_0 = arith.constant 0 : i32
    %c0_i32_1 = arith.constant 0 : i32
    %c0_i32_2 = arith.constant 0 : i32
    return %c0_i32, %arg0, %c0_i32_0, %c0_i32_1 : i32, i32, i32, i32
  }
}

</mosaic_0001>

<llo_original>
// kernel: custom-call
$region0: #{custom-call}
  %s0 = inlined_call_operand.vmem [shape: f32[2,4,16,16], index: 0, kind: input, shape index: {}]
  %s1 = inlined_call_operand.vmem [shape: f32[2,4,16,16], index: 1, kind: input, shape index: {}]
  %s2 = inlined_call_operand.hbm [shape: c64[2,4,16,16], index: 2, kind: output, shape index: {}]
  %s3 = scalar_lea.hbm %s2, 2048
  $region1: #{custom-call} parent=0
    #allocation0 [shape = 's32[1]{0}', space=sflag, size = 0x4, scoped, tag = 'scoped memory for custom-call']
    %4 = vsyncpa [#allocation0], 0
    %s5 = sshll.u32 %s0, 4
    %s6 = int_to_ptr.vmem [resolvable:$true] %s5
    %8 = dma.vmem_to_hbm [thread:$0]  %s6, 2048, %s2, [#allocation0]
    %9 = dma.done [#allocation0], 2048
    %10 = vsyncpa [#allocation0], 1
  $region2: #{custom-call} parent=0
    #allocation1 [shape = 's32[1]{0}', space=sflag, size = 0x4, scoped, tag = 'scoped memory for custom-call']
    %11 = vsyncpa [#allocation1], 0
    %s12 = sshll.u32 %s1, 4
    %s13 = int_to_ptr.vmem [resolvable:$true] %s12
    %15 = dma.vmem_to_hbm [thread:$0]  %s13, 2048, %s3, [#allocation1]
    %16 = dma.done [#allocation1], 2048
    %17 = vsyncpa [#allocation1], 1

// kernel: generator_forward.3
$region0: #{generator_forward.3}
  #allocation0 [shape = 'u32[]', space=smem, size = 0x4, offset = 0x4, fixed_abs, tag = 'smem constant byte address 0x4 - core index']
  #allocation1 [shape = 'u32[144,128]{1,0:T(1,128)}', space=vmem, size = 0x12000, scoped, tag = 'internal scratch']
  %s0 = inlined_call_operand.vmem [shape: f32[2], index: 0, kind: input, shape index: {}]
  %s1 = inlined_call_operand.vmem [shape: f32[2], index: 1, kind: input, shape index: {}]
  %s2 = inlined_call_operand.vmem [shape: f32[2,36,256], index: 2, kind: input, shape index: {}]
  %s3 = inlined_call_operand.vmem [shape: f32[4,36], index: 3, kind: input, shape index: {}]
  %s4 = inlined_call_operand.vmem [shape: f32[4,1], index: 4, kind: input, shape index: {}]
  %s5 = inlined_call_operand.vmem [shape: f32[2,4,256], index: 5, kind: input, shape index: {}]
  %s6 = inlined_call_operand.vmem [shape: f32[1,2,4,256], index: 6, kind: input, shape index: {}]
  %s7 = inlined_call_operand.vmem [shape: f32[2,4,256], index: 7, kind: output, shape index: {0}]
  %s8 = inlined_call_operand.vmem [shape: f32[2,4,256], index: 8, kind: output, shape index: {1}]
  %s9 = inlined_call_operand.vmem [shape: f32[2,4,256], index: 9, kind: output, shape index: {2}]
  %s10 = inlined_call_operand.vmem [shape: f32[1,2,4,256], index: 10, kind: output, shape index: {3}]
  %s11 = inlined_call_operand.vmem [shape: f32[1,2,4,256], index: 11, kind: output, shape index: {4}]
  %12 = xla_tuple %s7, %s8, %s9, %s10, %s11
  %s13 = sld [smem:[#allocation0]]
  $region101: #{generator_forward.3} parent=0
    _
  %s15 = ssub.s32 1, %s13
  %s16 = scalar_select 0, %s15, %s13
  $region1: #{generator_forward.3} parent=0
    #allocation2 [shape = 'u8[512]{0}', space=smem, size = 0x200, scoped, tag = 'input window, operand 0, single buffered']
    #allocation3 [shape = 's32[2]{0}', space=sflag, size = 0x8, scoped, tag = 'scoped memory for generator_forward.3']
    #allocation4 [shape = 'u8[512]{0}', space=smem, size = 0x200, scoped, tag = 'input window, operand 1, single buffered']
    #allocation5 [shape = 's32[1]{0}', space=sflag, size = 0x4, scoped, tag = 'scoped memory for generator_forward.3']
    %17 = vsyncpa [#allocation3], 0
    %18 = vsyncpa [#allocation5], 0
    loop: start=0, step=1, limit=4
    $region2: #{generator_forward.3} parent=1 // loop_pre_header
      _
    $region3: #{generator_forward.3} parent=1 // loop_header
      %s20 = sphi 0, %s24
      %p21 = scmp.ge.s32.totalorder %s20, 4
      %s28 = sphi 0, %s28
      %s30 = sphi 0, %s28
      %s31 = sphi 0, %s30
      %s45 = sphi 0, %s31
      %s49 = sphi 0, %s49
      %s51 = sphi 0, %s49
      %s52 = sphi 0, %s51
      %s66 = sphi 0, %s52
      %s72 = sphi 0, %s74
      %s75 = sphi 0, %s72
      %s76 = sphi 0, %s75
      %s92 = sphi 0, %s76
      %s96 = sphi 0, %s96
      %s98 = sphi 0, %s96
      %s99 = sphi 0, %s98
      %s113 = sphi 0, %s99
      %s117 = sphi 0, %s117
      %s119 = sphi 0, %s117
      %s120 = sphi 0, %s119
      %s134 = sphi 0, %s120
      %s140 = sphi 0, %s142
      %s143 = sphi 0, %s140
      %s144 = sphi 0, %s143
      %s160 = sphi 0, %s144
      %s166 = sphi 0, %s168
      %s169 = sphi 0, %s166
      %s170 = sphi 0, %s169
      %s186 = sphi 0, %s170
      %s192 = sphi 0, %s194
      %s195 = sphi 0, %s192
      %s196 = sphi 0, %s195
      %s212 = sphi 0, %s196
      %s218 = sphi 0, %s220
      %s221 = sphi 0, %s218
      %s222 = sphi 0, %s221
      %s238 = sphi 0, %s222
      %s244 = sphi 0, %s246
      %s247 = sphi 0, %s244
      %s248 = sphi 0, %s247
      %s264 = sphi 0, %s248
      %s270 = sphi 0, %s272
      %s273 = sphi 0, %s270
      %s274 = sphi 0, %s273
      %s290 = sphi 0, %s274
      %s296 = sphi 0, %s298
      %s299 = sphi 0, %s296
      %s300 = sphi 0, %s299
      %s316 = sphi 0, %s300
    $region4: #{generator_forward.3} parent=1 // loop_header_branch
      %23 = sbr.rel (%p21) target = $region8
    $region5: #{generator_forward.3} parent=1 // loop_body
      %s25 = ssub.s32 %s20, 1
      %s26 = ssub.s32 %s20, 2
      %s27 = sadd.s32 %s20, 1
      %s29 = sadd.s32 %s28, 1
      %p32 = scmp.eq.s32.totalorder %s20, 1
      %p33 = scmp.ne.s32.totalorder %s28, %s30
      %p34 = scmp.eq.s32.totalorder %s20, 0
      %p35 = por %p33, %p34
      %p36 = scmp.ne.s32.totalorder %s28, %s30
      %p37 = scmp.eq.s32.totalorder %s25, 1
      %p38 = por %p36, %p37
      %p39 = scmp.ne.s32.totalorder %s30, %s31
      %p40 = scmp.eq.s32.totalorder %s25, 0
      %p41 = por %p39, %p40
      %p42 = scmp.ne.s32.totalorder %s30, %s31
      %p43 = scmp.eq.s32.totalorder %s26, 1
      %p44 = por %p42, %p43
      %p46 = scmp.ne.s32.totalorder %s31, %s45
      %p47 = scmp.eq.s32.totalorder %s26, 0
      %p48 = por %p46, %p47
      %s50 = sadd.s32 %s49, 1
      %p53 = scmp.eq.s32.totalorder %s20, 1
      %p54 = scmp.ne.s32.totalorder %s49, %s51
      %p55 = scmp.eq.s32.totalorder %s20, 0
      %p56 = por %p54, %p55
      %p57 = scmp.ne.s32.totalorder %s49, %s51
      %p58 = scmp.eq.s32.totalorder %s25, 1
      %p59 = por %p57, %p58
      %p60 = scmp.ne.s32.totalorder %s51, %s52
      %p61 = scmp.eq.s32.totalorder %s25, 0
      %p62 = por %p60, %p61
      %p63 = scmp.ne.s32.totalorder %s51, %s52
      %p64 = scmp.eq.s32.totalorder %s26, 1
      %p65 = por %p63, %p64
      %p67 = scmp.ne.s32.totalorder %s52, %s66
      %p68 = scmp.eq.s32.totalorder %s26, 0
      %p69 = por %p67, %p68
      %s70 = ssub.s32 %s20, %s27
      %p71 = scmp.eq.s32.totalorder %s70, 0
      %s73 = sadd.s32 %s72, 1
      %s74 = scalar_select %p71, %s72, %s73
      %p77 = pneg %p71
      %p78 = scmp.eq.s32.totalorder %s20, 1
      %p79 = por %p77, %p78
      %p80 = scmp.ne.s32.totalorder %s72, %s75
      %p81 = scmp.eq.s32.totalorder %s20, 0
      %p82 = por %p80, %p81
      %p83 = scmp.ne.s32.totalorder %s72, %s75
      %p84 = scmp.eq.s32.totalorder %s25, 1
      %p85 = por %p83, %p84
      %p86 = scmp.ne.s32.totalorder %s75, %s76
      %p87 = scmp.eq.s32.totalorder %s25, 0
      %p88 = por %p86, %p87
      %p89 = scmp.ne.s32.totalorder %s75, %s76
      %p90 = scmp.eq.s32.totalorder %s26, 1
      %p91 = por %p89, %p90
      %p93 = scmp.ne.s32.totalorder %s76, %s92
      %p94 = scmp.eq.s32.totalorder %s26, 0
      %p95 = por %p93, %p94
      %s97 = sadd.s32 %s96, 1
      %p100 = scmp.eq.s32.totalorder %s20, 1
      %p101 = scmp.ne.s32.totalorder %s96, %s98
      %p102 = scmp.eq.s32.totalorder %s20, 0
      %p103 = por %p101, %p102
      %p104 = scmp.ne.s32.totalorder %s96, %s98
      %p105 = scmp.eq.s32.totalorder %s25, 1
      %p106 = por %p104, %p105
      %p107 = scmp.ne.s32.totalorder %s98, %s99
      %p108 = scmp.eq.s32.totalorder %s25, 0
      %p109 = por %p107, %p108
      %p110 = scmp.ne.s32.totalorder %s98, %s99
      %p111 = scmp.eq.s32.totalorder %s26, 1
      %p112 = por %p110, %p111
      %p114 = scmp.ne.s32.totalorder %s99, %s113
      %p115 = scmp.eq.s32.totalorder %s26, 0
      %p116 = por %p114, %p115
      %s118 = sadd.s32 %s117, 1
      %p121 = scmp.eq.s32.totalorder %s20, 1
      %p122 = scmp.ne.s32.totalorder %s117, %s119
      %p123 = scmp.eq.s32.totalorder %s20, 0
      %p124 = por %p122, %p123
      %p125 = scmp.ne.s32.totalorder %s117, %s119
      %p126 = scmp.eq.s32.totalorder %s25, 1
      %p127 = por %p125, %p126
      %p128 = scmp.ne.s32.totalorder %s119, %s120
      %p129 = scmp.eq.s32.totalorder %s25, 0
      %p130 = por %p128, %p129
      %p131 = scmp.ne.s32.totalorder %s119, %s120
      %p132 = scmp.eq.s32.totalorder %s26, 1
      %p133 = por %p131, %p132
      %p135 = scmp.ne.s32.totalorder %s120, %s134
      %p136 = scmp.eq.s32.totalorder %s26, 0
      %p137 = por %p135, %p136
      %s138 = ssub.s32 %s20, %s27
      %p139 = scmp.eq.s32.totalorder %s138, 0
      %s141 = sadd.s32 %s140, 1
      %s142 = scalar_select %p139, %s140, %s141
      %p145 = pneg %p139
      %p146 = scmp.eq.s32.totalorder %s20, 1
      %p147 = por %p145, %p146
      %p148 = scmp.ne.s32.totalorder %s140, %s143
      %p149 = scmp.eq.s32.totalorder %s20, 0
      %p150 = por %p148, %p149
      %p151 = scmp.ne.s32.totalorder %s140, %s143
      %p152 = scmp.eq.s32.totalorder %s25, 1
      %p153 = por %p151, %p152
      %p154 = scmp.ne.s32.totalorder %s143, %s144
      %p155 = scmp.eq.s32.totalorder %s25, 0
      %p156 = por %p154, %p155
      %p157 = scmp.ne.s32.totalorder %s143, %s144
      %p158 = scmp.eq.s32.totalorder %s26, 1
      %p159 = por %p157, %p158
      %p161 = scmp.ne.s32.totalorder %s144, %s160
      %p162 = scmp.eq.s32.totalorder %s26, 0
      %p163 = por %p161, %p162
      %s164 = ssub.s32 %s20, %s27
      %p165 = scmp.eq.s32.totalorder %s164, 0
      %s167 = sadd.s32 %s166, 1
      %s168 = scalar_select %p165, %s166, %s167
      %p171 = pneg %p165
      %p172 = scmp.eq.s32.totalorder %s20, 1
      %p173 = por %p171, %p172
      %p174 = scmp.ne.s32.totalorder %s166, %s169
      %p175 = scmp.eq.s32.totalorder %s20, 0
      %p176 = por %p174, %p175
      %p177 = scmp.ne.s32.totalorder %s166, %s169
      %p178 = scmp.eq.s32.totalorder %s25, 1
      %p179 = por %p177, %p178
      %p180 = scmp.ne.s32.totalorder %s169, %s170
      %p181 = scmp.eq.s32.totalorder %s25, 0
      %p182 = por %p180, %p181
      %p183 = scmp.ne.s32.totalorder %s169, %s170
      %p184 = scmp.eq.s32.totalorder %s26, 1
      %p185 = por %p183, %p184
      %p187 = scmp.ne.s32.totalorder %s170, %s186
      %p188 = scmp.eq.s32.totalorder %s26, 0
      %p189 = por %p187, %p188
      %s190 = ssub.s32 %s20, %s27
      %p191 = scmp.eq.s32.totalorder %s190, 0
      %s193 = sadd.s32 %s192, 1
      %s194 = scalar_select %p191, %s192, %s193
      %p197 = pneg %p191
      %p198 = scmp.eq.s32.totalorder %s20, 1
      %p199 = por %p197, %p198
      %p200 = scmp.ne.s32.totalorder %s192, %s195
      %p201 = scmp.eq.s32.totalorder %s20, 0
      %p202 = por %p200, %p201
      %p203 = scmp.ne.s32.totalorder %s192, %s195
      %p204 = scmp.eq.s32.totalorder %s25, 1
      %p205 = por %p203, %p204
      %p206 = scmp.ne.s32.totalorder %s195, %s196
      %p207 = scmp.eq.s32.totalorder %s25, 0
      %p208 = por %p206, %p207
      %p209 = scmp.ne.s32.totalorder %s195, %s196
      %p210 = scmp.eq.s32.totalorder %s26, 1
      %p211 = por %p209, %p210
      %p213 = scmp.ne.s32.totalorder %s196, %s212
      %p214 = scmp.eq.s32.totalorder %s26, 0
      %p215 = por %p213, %p214
      %s216 = ssub.s32 %s20, %s27
      %p217 = scmp.eq.s32.totalorder %s216, 0
      %s219 = sadd.s32 %s218, 1
      %s220 = scalar_select %p217, %s218, %s219
      %p223 = pneg %p217
      %p224 = scmp.eq.s32.totalorder %s20, 1
      %p225 = por %p223, %p224
      %p226 = scmp.ne.s32.totalorder %s218, %s221
      %p227 = scmp.eq.s32.totalorder %s20, 0
      %p228 = por %p226, %p227
      %p229 = scmp.ne.s32.totalorder %s218, %s221
      %p230 = scmp.eq.s32.totalorder %s25, 1
      %p231 = por %p229, %p230
      %p232 = scmp.ne.s32.totalorder %s221, %s222
      %p233 = scmp.eq.s32.totalorder %s25, 0
      %p234 = por %p232, %p233
      %p235 = scmp.ne.s32.totalorder %s221, %s222
      %p236 = scmp.eq.s32.totalorder %s26, 1
      %p237 = por %p235, %p236
      %p239 = scmp.ne.s32.totalorder %s222, %s238
      %p240 = scmp.eq.s32.totalorder %s26, 0
      %p241 = por %p239, %p240
      %s242 = ssub.s32 %s20, %s27
      %p243 = scmp.eq.s32.totalorder %s242, 0
      %s245 = sadd.s32 %s244, 1
      %s246 = scalar_select %p243, %s244, %s245
      %p249 = pneg %p243
      %p250 = scmp.eq.s32.totalorder %s20, 1
      %p251 = por %p249, %p250
      %p252 = scmp.ne.s32.totalorder %s244, %s247
      %p253 = scmp.eq.s32.totalorder %s20, 0
      %p254 = por %p252, %p253
      %p255 = scmp.ne.s32.totalorder %s244, %s247
      %p256 = scmp.eq.s32.totalorder %s25, 1
      %p257 = por %p255, %p256
      %p258 = scmp.ne.s32.totalorder %s247, %s248
      %p259 = scmp.eq.s32.totalorder %s25, 0
      %p260 = por %p258, %p259
      %p261 = scmp.ne.s32.totalorder %s247, %s248
      %p262 = scmp.eq.s32.totalorder %s26, 1
      %p263 = por %p261, %p262
      %p265 = scmp.ne.s32.totalorder %s248, %s264
      %p266 = scmp.eq.s32.totalorder %s26, 0
      %p267 = por %p265, %p266
      %s268 = ssub.s32 %s20, %s27
      %p269 = scmp.eq.s32.totalorder %s268, 0
      %s271 = sadd.s32 %s270, 1
      %s272 = scalar_select %p269, %s270, %s271
      %p275 = pneg %p269
      %p276 = scmp.eq.s32.totalorder %s20, 1
      %p277 = por %p275, %p276
      %p278 = scmp.ne.s32.totalorder %s270, %s273
      %p279 = scmp.eq.s32.totalorder %s20, 0
      %p280 = por %p278, %p279
      %p281 = scmp.ne.s32.totalorder %s270, %s273
      %p282 = scmp.eq.s32.totalorder %s25, 1
      %p283 = por %p281, %p282
      %p284 = scmp.ne.s32.totalorder %s273, %s274
      %p285 = scmp.eq.s32.totalorder %s25, 0
      %p286 = por %p284, %p285
      %p287 = scmp.ne.s32.totalorder %s273, %s274
      %p288 = scmp.eq.s32.totalorder %s26, 1
      %p289 = por %p287, %p288
      %p291 = scmp.ne.s32.totalorder %s274, %s290
      %p292 = scmp.eq.s32.totalorder %s26, 0
      %p293 = por %p291, %p292
      %s294 = ssub.s32 %s20, %s27
      %p295 = scmp.eq.s32.totalorder %s294, 0
      %s297 = sadd.s32 %s296, 1
      %s298 = scalar_select %p295, %s296, %s297
      %p301 = pneg %p295
      %p302 = scmp.eq.s32.totalorder %s20, 1
      %p303 = por %p301, %p302
      %p304 = scmp.ne.s32.totalorder %s296, %s299
      %p305 = scmp.eq.s32.totalorder %s20, 0
      %p306 = por %p304, %p305
      %p307 = scmp.ne.s32.totalorder %s296, %s299
      %p308 = scmp.eq.s32.totalorder %s25, 1
      %p309 = por %p307, %p308
      %p310 = scmp.ne.s32.totalorder %s299, %s300
      %p311 = scmp.eq.s32.totalorder %s25, 0
      %p312 = por %p310, %p311
      %p313 = scmp.ne.s32.totalorder %s299, %s300
      %p314 = scmp.eq.s32.totalorder %s26, 1
      %p315 = por %p313, %p314
      %p317 = scmp.ne.s32.totalorder %s300, %s316
      %p318 = scmp.eq.s32.totalorder %s26, 0
      %p319 = por %p317, %p318
      %p320 = scmp.le.s32.totalorder 1, %s20
      %p321 = scmp.lt.s32.totalorder %s20, 3
      %p322 = pnand %p320, %p321
      %p323 = pneg %p322
      // Predicated region
      $region9: #{generator_forward.3} parent=5 // pred_check
        _
      $region10: #{generator_forward.3} parent=5 // pred_check_branch
        %325 = sbr.rel (%p322) target = $region12
      $region11: #{generator_forward.3} parent=5 // pred_region
        %s326 = ssub.s32 %s20, 1
        // Predicated region
        $region13: #{generator_forward.3} parent=11 // pred_check
          %p327 = pneg %p41
        $region14: #{generator_forward.3} parent=11 // pred_check_branch
          %329 = sbr.rel (%p327) target = $region16
        $region15: #{generator_forward.3} parent=11 // pred_region
          %s331 = ssub.s32 16, 16
          %332 = vsyncadd [#allocation3], %s331
          %s334 = sshll.u32 %s0, 4
          %s335 = int_to_ptr.vmem [resolvable:$true] %s334
          %337 = dma.vmem_to_smem %s335, 16, [#allocation2], [#allocation3]
        $region16: #{generator_forward.3} parent=11 // pred_fallthru
          _
        // Predicated region
        $region17: #{generator_forward.3} parent=11 // pred_check
          %p338 = pneg %p62
        $region18: #{generator_forward.3} parent=11 // pred_check_branch
          %340 = sbr.rel (%p338) target = $region20
        $region19: #{generator_forward.3} parent=11 // pred_region
          %s342 = ssub.s32 16, 16
          %343 = vsyncadd [#allocation5], %s342
          %s345 = sshll.u32 %s1, 4
          %s346 = int_to_ptr.vmem [resolvable:$true] %s345
          %348 = dma.vmem_to_smem %s346, 16, [#allocation4], [#allocation5]
        $region20: #{generator_forward.3} parent=11 // pred_fallthru
          _
        // Predicated region
        $region21: #{generator_forward.3} parent=11 // pred_check
          %p349 = pneg %p109
        $region22: #{generator_forward.3} parent=11 // pred_check_branch
          %351 = sbr.rel (%p349) target = $region24
        $region23: #{generator_forward.3} parent=11 // pred_region
          _
        $region24: #{generator_forward.3} parent=11 // pred_fallthru
          _
        // Predicated region
        $region25: #{generator_forward.3} parent=11 // pred_check
          %p352 = pneg %p130
        $region26: #{generator_forward.3} parent=11 // pred_check_branch
          %354 = sbr.rel (%p352) target = $region28
        $region27: #{generator_forward.3} parent=11 // pred_region
          _
        $region28: #{generator_forward.3} parent=11 // pred_fallthru
          _
      $region12: #{generator_forward.3} parent=5 // pred_fallthru
        _
      %p355 = scmp.lt.s32.totalorder %s20, 2
      // Predicated region
      $region29: #{generator_forward.3} parent=5 // pred_check
        %p356 = pneg %p355
      $region30: #{generator_forward.3} parent=5 // pred_check_branch
        %358 = sbr.rel (%p356) target = $region32
      $region31: #{generator_forward.3} parent=5 // pred_region
        // Predicated region
        $region33: #{generator_forward.3} parent=31 // pred_check
          %p359 = pneg %p82
        $region34: #{generator_forward.3} parent=31 // pred_check_branch
          %361 = sbr.rel (%p359) target = $region36
        $region35: #{generator_forward.3} parent=31 // pred_region
          %p362 = scmp.lt.s32.totalorder %s20, 1
          %s363 = scalar_select %p362, %s20, 1
          %s364 = smul.addr %s363, 10
          %s365 = smul.addr %s364, 8
          %s366 = scalar_lea.vmem %s2, %s365
        $region36: #{generator_forward.3} parent=31 // pred_fallthru
          _
        // Predicated region
        $region37: #{generator_forward.3} parent=31 // pred_check
          %p367 = pneg %p150
        $region38: #{generator_forward.3} parent=31 // pred_check_branch
          %369 = sbr.rel (%p367) target = $region40
        $region39: #{generator_forward.3} parent=31 // pred_region
          %p370 = scmp.lt.s32.totalorder %s20, 1
          %s371 = scalar_select %p370, %s20, 1
          %s372 = smul.addr %s371, 2
          %s373 = smul.addr %s372, 4
          %s374 = scalar_lea.vmem %s5, %s373
        $region40: #{generator_forward.3} parent=31 // pred_fallthru
          _
        // Predicated region
        $region41: #{generator_forward.3} parent=31 // pred_check
          %p375 = pneg %p176
        $region42: #{generator_forward.3} parent=31 // pred_check_branch
          %377 = sbr.rel (%p375) target = $region44
        $region43: #{generator_forward.3} parent=31 // pred_region
          %p378 = scmp.lt.s32.totalorder %s20, 1
          %s379 = scalar_select %p378, %s20, 1
          %s380 = smul.addr %s379, 2
          %s381 = smul.addr %s380, 4
          %s382 = scalar_lea.vmem %s6, %s381
        $region44: #{generator_forward.3} parent=31 // pred_fallthru
          _
      $region32: #{generator_forward.3} parent=5 // pred_fallthru
        _
      %p383 = scmp.le.s32.totalorder 1, %s20
      %p384 = scmp.lt.s32.totalorder %s20, 3
      %p385 = pnand %p383, %p384
      %p386 = pneg %p385
      // Predicated region
      $region45: #{generator_forward.3} parent=5 // pred_check
        _
      $region46: #{generator_forward.3} parent=5 // pred_check_branch
        %388 = sbr.rel (%p385) target = $region48
      $region47: #{generator_forward.3} parent=5 // pred_region
        %s389 = ssub.s32 %s20, 1
        // Predicated region
        $region49: #{generator_forward.3} parent=47 // pred_check
          %p390 = pneg %p41
        $region50: #{generator_forward.3} parent=47 // pred_check_branch
          %392 = sbr.rel (%p390) target = $region52
        $region51: #{generator_forward.3} parent=47 // pred_region
          %393 = dma.done [#allocation3], 16
        $region52: #{generator_forward.3} parent=47 // pred_fallthru
          _
        // Predicated region
        $region53: #{generator_forward.3} parent=47 // pred_check
          %p394 = pneg %p62
        $region54: #{generator_forward.3} parent=47 // pred_check_branch
          %396 = sbr.rel (%p394) target = $region56
        $region55: #{generator_forward.3} parent=47 // pred_region
          %397 = dma.done [#allocation5], 16
        $region56: #{generator_forward.3} parent=47 // pred_fallthru
          _
        %398 = sfence
        %p399 = pneg %p41
        %p400 = pneg %p38
        %p401 = pneg %p62
        %p402 = pneg %p59
        %p403 = scmp.lt.s32.totalorder %s25, 1
        %s404 = scalar_select %p403, %s25, 1
        %s405 = smul.addr %s404, 10
        %s406 = smul.addr %s405, 8
        %s407 = scalar_lea.vmem %s2, %s406
        %p408 = pneg %p88
        %p409 = pneg %p85
        %p410 = pneg %p109
        %p411 = pneg %p106
        %p412 = pneg %p130
        %p413 = pneg %p127
        %p414 = scmp.lt.s32.totalorder %s25, 1
        %s415 = scalar_select %p414, %s25, 1
        %s416 = smul.addr %s415, 2
        %s417 = smul.addr %s416, 4
        %s418 = scalar_lea.vmem %s5, %s417
        %p419 = pneg %p156
        %p420 = pneg %p153
        %p421 = scmp.lt.s32.totalorder %s25, 1
        %s422 = scalar_select %p421, %s25, 1
        %s423 = smul.addr %s422, 2
        %s424 = smul.addr %s423, 4
        %s425 = scalar_lea.vmem %s6, %s424
        %p426 = pneg %p182
        %p427 = pneg %p179
        %p428 = pneg %p208
        %p429 = pneg %p205
        %p430 = scmp.lt.s32.totalorder %s25, 1
        %s431 = scalar_select %p430, %s25, 1
        %s432 = smul.addr %s431, 2
        %s433 = smul.addr %s432, 4
        %s434 = scalar_lea.vmem %s7, %s433
        %p435 = pneg %p234
        %p436 = pneg %p231
        %p437 = scmp.lt.s32.totalorder %s25, 1
        %s438 = scalar_select %p437, %s25, 1
        %s439 = smul.addr %s438, 2
        %s440 = smul.addr %s439, 4
        %s441 = scalar_lea.vmem %s8, %s440
        %p442 = pneg %p260
        %p443 = pneg %p257
        %p444 = scmp.lt.s32.totalorder %s25, 1
        %s445 = scalar_select %p444, %s25, 1
        %s446 = smul.addr %s445, 2
        %s447 = smul.addr %s446, 4
        %s448 = scalar_lea.vmem %s9, %s447
        %p449 = pneg %p286
        %p450 = pneg %p283
        %p451 = scmp.lt.s32.totalorder %s25, 1
        %s452 = scalar_select %p451, %s25, 1
        %s453 = smul.addr %s452, 2
        %s454 = smul.addr %s453, 4
        %s455 = scalar_lea.vmem %s10, %s454
        %p456 = pneg %p312
        %p457 = pneg %p309
        %p458 = scmp.lt.s32.totalorder %s25, 1
        %s459 = scalar_select %p458, %s25, 1
        %s460 = smul.addr %s459, 2
        %s461 = smul.addr %s460, 4
        %s462 = scalar_lea.vmem %s11, %s461
        %p463 = scmp.lt.s32.totalorder %s25, 1
        %s464 = scalar_select %p463, %s25, 1
        %s465 = smul.addr %s464, 10
        %s466 = smul.addr %s465, 8
        %s467 = scalar_lea.vmem %s2, %s466
        %p468 = scmp.lt.s32.totalorder %s25, 1
        %s469 = scalar_select %p468, %s25, 1
        %s470 = smul.addr %s469, 2
        %s471 = smul.addr %s470, 4
        %s472 = scalar_lea.vmem %s5, %s471
        %p473 = scmp.lt.s32.totalorder %s25, 1
        %s474 = scalar_select %p473, %s25, 1
        %s475 = smul.addr %s474, 2
        %s476 = smul.addr %s475, 4
        %s477 = scalar_lea.vmem %s6, %s476
        %p478 = scmp.lt.s32.totalorder %s25, 1
        %s479 = scalar_select %p478, %s25, 1
        %s480 = smul.addr %s479, 2
        %s481 = smul.addr %s480, 4
        %s482 = scalar_lea.vmem %s7, %s481
        %p483 = scmp.lt.s32.totalorder %s25, 1
        %s484 = scalar_select %p483, %s25, 1
        %s485 = smul.addr %s484, 2
        %s486 = smul.addr %s485, 4
        %s487 = scalar_lea.vmem %s8, %s486
        %p488 = scmp.lt.s32.totalorder %s25, 1
        %s489 = scalar_select %p488, %s25, 1
        %s490 = smul.addr %s489, 2
        %s491 = smul.addr %s490, 4
        %s492 = scalar_lea.vmem %s9, %s491
        %p493 = scmp.lt.s32.totalorder %s25, 1
        %s494 = scalar_select %p493, %s25, 1
        %s495 = smul.addr %s494, 2
        %s496 = smul.addr %s495, 4
        %s497 = scalar_lea.vmem %s10, %s496
        %p498 = scmp.lt.s32.totalorder %s25, 1
        %s499 = scalar_select %p498, %s25, 1
        %s500 = smul.addr %s499, 2
        %s501 = smul.addr %s500, 4
        %s502 = scalar_lea.vmem %s11, %s501
        %v503 = vld [vmem:[%s3] sm:$0xf]
        %v504 = vld [vmem:[%s467] sm:$0xff]
        %v505 = vld [vmem:[%s467 + $0x8] sm:$0xff]
        %v506 = vld [vmem:[%s467 + $0x10] sm:$0xff]
        %v507 = vld [vmem:[%s467 + $0x18] sm:$0xff]
        %v508 = vld [vmem:[%s467 + $0x20] sm:$0xff]
        %v509 = vld [vmem:[%s467 + $0x28] sm:$0xff]
        %v510 = vld [vmem:[%s467 + $0x30] sm:$0xff]
        %v511 = vld [vmem:[%s467 + $0x38] sm:$0xff]
        %v512 = vld [vmem:[%s467 + $0x40] sm:$0xf]
        %v513 = vld [vmem:[%s467 + $0x48] sm:$0xf]
        %v514 = vld [vmem:[%s4] sm:$0xf]
        %516 = vset.pattern.permute.xlu0 0
        %517 = vperm.xlu0 %516, %v514
        %v518 = vpop.permute.xlu0 %517
        %vm520 = vcmask 293888
        %v522 = vsel %vm520, %v503, 0
        %vm524 = vcmask 1043456
        %v526 = vsel %vm524, %v512, 0
        %v529 = vsel %vm524, %v513, 0
        %531 = vmatprep.subr.mxu0 %v505
        %532 = vmatpush1.msra.mxu0 %v504
        %533 = vmatprep.subr.mxu0 %v507
        %534 = vmatpush1.msra.mxu0 %v506
        %535 = vmatprep.subr.mxu0 %v509
        %536 = vmatpush1.msra.mxu0 %v508
        %537 = vmatprep.subr.mxu0 %v511
        %538 = vmatpush1.msra.mxu0 %v510
        %539 = vmatprep.subr.mxu0 %v529
        %540 = vmatpush1.msra.mxu0 %v526
        %541 = vmatprep.subr.mxu0 0.0
        %542 = vmatpush1.msra.mxu0 0.0
        %543 = vmatprep.subr.mxu0 0.0
        %544 = vmatpush1.msra.mxu0 0.0
        %545 = vmatprep.subr.mxu0 0.0
        %546 = vmatpush1.msra.mxu0 0.0
        %547 = vmatprep.subr.mxu0 0.0
        %548 = vmatpush1.msra.mxu0 0.0
        %549 = vmatprep.subr.mxu0 0.0
        %550 = vmatpush1.msra.mxu0 0.0
        %551 = vmatprep.subr.mxu0 0.0
        %552 = vmatpush1.msra.mxu0 0.0
        %553 = vmatprep.subr.mxu0 0.0
        %554 = vmatpush1.msra.mxu0 0.0
        %555 = vmatprep.subr.mxu0 0.0
        %556 = vmatpush1.msra.mxu0 0.0
        %557 = vmatprep.subr.mxu0 0.0
        %558 = vmatpush1.msra.mxu0 0.0
        %559 = vmatprep.subr.mxu0 0.0
        %560 = vmatpush1.msra.mxu0 0.0
        %561 = vmatprep.subr.mxu0 0.0
        %562 = vmatpush1.msra.mxu0 0.0
        %563 = vmatprep.subr.mxu0 0.0
        %564 = vmatpush1.msra.mxu0 0.0
        %565 = vmatprep.subr.mxu0 0.0
        %566 = vmatpush1.msra.mxu0 0.0
        %567 = vmatprep.subr.mxu0 0.0
        %568 = vmatpush1.msra.mxu0 0.0
        %569 = vmatprep.subr.mxu0 0.0
        %570 = vmatpush1.msra.mxu0 0.0
        %571 = vmatprep.subr.mxu0 0.0
        %572 = vmatpush1.msra.mxu0 0.0
        %573 = vmatprep.subr.mxu0 0.0
        %574 = vmatpush1.msra.mxu0 0.0
        %575 = vmatprep.subr.mxu0 0.0
        %576 = vmatpush1.msra.mxu0 0.0
        %577 = vmatprep.subr.mxu0 0.0
        %578 = vmatpush1.msra.mxu0 0.0
        %579 = vmatprep.subr.mxu0 0.0
        %580 = vmatpush1.msra.mxu0 0.0
        %581 = vmatprep.subr.mxu0 0.0
        %582 = vmatpush1.msra.mxu0 0.0
        %583 = vmatprep.subr.mxu0 0.0
        %584 = vmatpush1.msra.mxu0 0.0
        %585 = vmatprep.subr.mxu0 0.0
        %586 = vmatpush1.msra.mxu0 0.0
        %587 = vmatprep.subr.mxu0 0.0
        %588 = vmatpush1.msra.mxu0 0.0
        %589 = vmatprep.subr.mxu0 0.0
        %590 = vmatpush1.msra.mxu0 0.0
        %591 = vmatprep.subr.mxu0 0.0
        %592 = vmatpush1.msra.mxu0 0.0
        %593 = vmatprep.subr.mxu0 0.0
        %594 = vmatpush1.msra.mxu0 0.0
        %595 = vmatprep.mubr.f32.mxu0 0.0
        %596 = vmatmul.mubr.f32.gmra.mrb[0].mxu0 %v522
        %v597 = vpop.f32.mrb[0].mxu0
        %v598 = vadd.f32 %v518, %v597
        %v599 = vpop.f32.mrb[0].mxu0
        %v600 = vadd.f32 %v518, %v599
        %601 = vdwg.mxu0
        %v602 = vmax.f32 %v598, 0.0
        %v603 = vmax.f32 %v600, 0.0
        %v606 = vcombine.low %v602, %v603
        %608 = vst [vmem:[%s482] sm:$0xff] %v606
        %v609 = vmul.f32 %v602, %v602
        %v610 = vmul.f32 %v603, %v603
        %v611 = vsel %vm524, %v609, 0.0
        %v612 = vsel %vm524, %v610, 0.0
        %v613 = vadd.f32 %v611, %v612
        %614 = vadd.xlane.f32.xlu0 %v613
        %v615 = vpop.xlane.xlu0 %614
        %v616 = vsel %vm524, %v615, 0.0
        %v617 = vrot.slane %v616, 4
        %v618 = vadd.f32 %v616, %v617
        %v619 = vrot.slane %v618, 2
        %v620 = vadd.f32 %v618, %v619
        %v621 = vrot.slane %v620, 1
        %v622 = vadd.f32 %v620, %v621
        %v623 = vrsqrt.pop %v622
        %v624 = vmul.f32 %v622, %v623
        %vm625 = vcmp.eq.f32.partialorder %v622, inf
        %v626 = vsel %vm625, %v622, %v624
        %vm627 = vcmp.eq.f32.partialorder %v622, 0.0
        %v628 = vand.u32 %v622, 2147483648
        %v629 = vsel %vm627, %v628, %v626
        %s630 = sld [smem:[#allocation2 + %s25]]
        %v631 = vstv %s630
        %v632 = vadd.f32 %v631, 0.0
        %v633 = vand.u32 2147483647, %v632
        %vm634 = vcmp.le.f32.partialorder %v633, 0.7853982
        %vm635 = vcmp.lt.s32.totalorder %v632, 0
        %v636 = vand.u32 %v632, 2139095040
        %v637 = vshrl.u32 %v636, 23
        %v638 = vsub.s32 %v637, 127
        %v639 = vand.u32 2147483647, %v632
        %v640 = vand.u32 %v639, 8388607
        %v641 = vor.u32 %v640, 8388608
        %v642 = vsub.s32 0, %v641
        %v643 = vadd.s32 %v638, 1
        %vm644 = vcmp.gt.s32.totalorder %v643, 0
        %v645 = vsel %vm644, %v643, 0
        %v646 = vshrl.u32 %v645, 5
        %v647 = vand.u32 %v645, 31
        %v648 = vsub.s32 32, %v647
        %v649 = vshrl.u32 683565275, %v648
        %v650 = vshll.u32 683565275, %v647
        %v651 = vshrl.u32 2475754826, %v648
        %v652 = vor.u32 %v650, %v651
        %v653 = vshll.u32 2475754826, %v647
        %v654 = vshrl.u32 2131351028, %v648
        %v655 = vor.u32 %v653, %v654
        %v656 = vshll.u32 2131351028, %v647
        %v657 = vshrl.u32 2102212464, %v648
        %v658 = vor.u32 %v656, %v657
        %v659 = vshll.u32 2102212464, %v647
        %v660 = vshrl.u32 920167782, %v648
        %v661 = vor.u32 %v659, %v660
        %v662 = vshll.u32 920167782, %v647
        %v663 = vshrl.u32 1326507024, %v648
        %v664 = vor.u32 %v662, %v663
        %vm665 = vcmp.lt.s32.totalorder %v646, 1
        %vm666 = vcmp.lt.s32.totalorder %v646, 2
        %vm667 = vcmp.lt.s32.totalorder %v646, 3
        %vm668 = vcmp.lt.s32.totalorder %v646, 4
        %v669 = vsel %vm665, %v649, %v652
        %v670 = vsel %vm668, %v658, 2102212464
        %v671 = vsel %vm667, %v655, %v670
        %v672 = vsel %vm666, %v669, %v671
        %v673 = vsel %vm665, %v652, %v655
        %v674 = vsel %vm668, %v661, 920167782
        %v675 = vsel %vm667, %v658, %v674
        %v676 = vsel %vm666, %v673, %v675
        %v677 = vsel %vm665, %v655, %v658
        %v678 = vsel %vm668, %v664, 1326507024
        %v679 = vsel %vm667, %v661, %v678
        %v680 = vsel %vm666, %v677, %v679
        %v681 = vshll.u32 %v641, 8
        %v682 = vmul.u32.u64.compose %v681, %v680
        %v683 = vextract.low.u32 %v682
        %v684 = vextract.high.u32 %v682
        %v685 = vmul.u32.u64.compose %v681, %v676
        %v686 = vextract.low.u32 %v685
        %v687 = vextract.high.u32 %v685
        %v688 = vmul.u32 %v681, %v672
        %v689 = vadd.s32 %v684, %v686
        %vm690 = vc.u32 %v684, %v686
        %v691 = vadd.s32 %v687, 1
        %v692 = vsel %vm690, %v691, %v687
        %v693 = vadd.s32 %v688, %v692
        %v694 = vadd.s32 %v693, 536870912
        %v695 = vshrl.u32 %v694, 30
        %v696 = vshll.u32 %v695, 30
        %v697 = vsub.s32 %v693, %v696
        %vm698 = vcmp.lt.s32.totalorder %v697, 0
        %v699 = vsub.s32 0, %v697
        %v700 = vsel %vm698, %v699, %v697
        %v701 = vclz %v700
        %v702 = vsub.s32 %v701, 2
        %vm703 = vcmp.gt.s32.totalorder 0, %v702
        %v704 = vsel %vm703, 0, %v702
        %v705 = vsub.s32 32, %v704
        %v706 = vshll.u32 %v697, %v704
        %v707 = vshrl.u32 %v689, %v705
        %v708 = vor.u32 %v706, %v707
        %v709 = vsub.s32 4294967266, %v704
        %v710 = vadd.s32 %v709, 127
        %v711 = vshll.u32 %v710, 23
        %v712 = vor.u32 4788187, %v711
        %v713 = vand.u32 2147483647, %v712
        %v715 = vcvt.s32.f32 %v708
        %v716 = vmul.f32 %v715, %v713
        %v717 = vxor.u32 %v716, 2147483648
        %v718 = vsel %vm635, %v717, %v716
        %v719 = vsub.s32 4, %v695
        %v720 = vsel %vm635, %v719, %v695
        %v721 = vsel %vm634, %v632, %v718
        %v722 = vsel %vm634, 0, %v720
        %v723 = vcosq.f32.pop %v721
        %v724 = vsinq.f32.pop %v721
        %vm725 = vweird.f32 %v632
        %v726 = vand.u32 %v722, 3
        %vm727 = vcmp.lt.s32.totalorder %v726, 2
        %vm728 = vcmp.eq.s32.totalorder %v726, 0
        %v729 = vxor.u32 %v724, 2147483648
        %v730 = vsel %vm728, %v723, %v729
        %vm731 = vcmp.eq.s32.totalorder %v726, 2
        %v732 = vxor.u32 %v723, 2147483648
        %v733 = vsel %vm731, %v732, %v724
        %v734 = vsel %vm727, %v730, %v733
        %v735 = vsel %vm725, nan, %v734
        %v736 = vand.u32 2147483647, %v632
        %vm737 = vcmp.le.f32.partialorder %v736, 0.7853982
        %vm738 = vcmp.lt.s32.totalorder %v632, 0
        %v739 = vand.u32 %v632, 2139095040
        %v740 = vshrl.u32 %v739, 23
        %v741 = vsub.s32 %v740, 127
        %v742 = vand.u32 2147483647, %v632
        %v743 = vand.u32 %v742, 8388607
        %v744 = vor.u32 %v743, 8388608
        %v745 = vsub.s32 0, %v744
        %v746 = vadd.s32 %v741, 1
        %vm747 = vcmp.gt.s32.totalorder %v746, 0
        %v748 = vsel %vm747, %v746, 0
        %v749 = vshrl.u32 %v748, 5
        %v750 = vand.u32 %v748, 31
        %v751 = vsub.s32 32, %v750
        %v752 = vshrl.u32 683565275, %v751
        %v753 = vshll.u32 683565275, %v750
        %v754 = vshrl.u32 2475754826, %v751
        %v755 = vor.u32 %v753, %v754
        %v756 = vshll.u32 2475754826, %v750
        %v757 = vshrl.u32 2131351028, %v751
        %v758 = vor.u32 %v756, %v757
        %v759 = vshll.u32 2131351028, %v750
        %v760 = vshrl.u32 2102212464, %v751
        %v761 = vor.u32 %v759, %v760
        %v762 = vshll.u32 2102212464, %v750
        %v763 = vshrl.u32 920167782, %v751
        %v764 = vor.u32 %v762, %v763
        %v765 = vshll.u32 920167782, %v750
        %v766 = vshrl.u32 1326507024, %v751
        %v767 = vor.u32 %v765, %v766
        %vm768 = vcmp.lt.s32.totalorder %v749, 1
        %vm769 = vcmp.lt.s32.totalorder %v749, 2
        %vm770 = vcmp.lt.s32.totalorder %v749, 3
        %vm771 = vcmp.lt.s32.totalorder %v749, 4
        %v772 = vsel %vm768, %v752, %v755
        %v773 = vsel %vm771, %v761, 2102212464
        %v774 = vsel %vm770, %v758, %v773
        %v775 = vsel %vm769, %v772, %v774
        %v776 = vsel %vm768, %v755, %v758
        %v777 = vsel %vm771, %v764, 920167782
        %v778 = vsel %vm770, %v761, %v777
        %v779 = vsel %vm769, %v776, %v778
        %v780 = vsel %vm768, %v758, %v761
        %v781 = vsel %vm771, %v767, 1326507024
        %v782 = vsel %vm770, %v764, %v781
        %v783 = vsel %vm769, %v780, %v782
        %v784 = vshll.u32 %v744, 8
        %v785 = vmul.u32.u64.compose %v784, %v783
        %v786 = vextract.low.u32 %v785
        %v787 = vextract.high.u32 %v785
        %v788 = vmul.u32.u64.compose %v784, %v779
        %v789 = vextract.low.u32 %v788
        %v790 = vextract.high.u32 %v788
        %v791 = vmul.u32 %v784, %v775
        %v792 = vadd.s32 %v787, %v789
        %vm793 = vc.u32 %v787, %v789
        %v794 = vadd.s32 %v790, 1
        %v795 = vsel %vm793, %v794, %v790
        %v796 = vadd.s32 %v791, %v795
        %v797 = vadd.s32 %v796, 536870912
        %v798 = vshrl.u32 %v797, 30
        %v799 = vshll.u32 %v798, 30
        %v800 = vsub.s32 %v796, %v799
        %vm801 = vcmp.lt.s32.totalorder %v800, 0
        %v802 = vsub.s32 0, %v800
        %v803 = vsel %vm801, %v802, %v800
        %v804 = vclz %v803
        %v805 = vsub.s32 %v804, 2
        %vm806 = vcmp.gt.s32.totalorder 0, %v805
        %v807 = vsel %vm806, 0, %v805
        %v808 = vsub.s32 32, %v807
        %v809 = vshll.u32 %v800, %v807
        %v810 = vshrl.u32 %v792, %v808
        %v811 = vor.u32 %v809, %v810
        %v812 = vsub.s32 4294967266, %v807
        %v813 = vadd.s32 %v812, 127
        %v814 = vshll.u32 %v813, 23
        %v815 = vor.u32 4788187, %v814
        %v816 = vand.u32 2147483647, %v815
        %v818 = vcvt.s32.f32 %v811
        %v819 = vmul.f32 %v818, %v816
        %v820 = vxor.u32 %v819, 2147483648
        %v821 = vsel %vm738, %v820, %v819
        %v822 = vsub.s32 4, %v798
        %v823 = vsel %vm738, %v822, %v798
        %v824 = vsel %vm737, %v632, %v821
        %v825 = vsel %vm737, 0, %v823
        %v826 = vcosq.f32.pop %v824
        %v827 = vsinq.f32.pop %v824
        %vm828 = vweird.f32 %v632
        %v829 = vadd.s32 %v825, 3
        %v830 = vand.u32 %v829, 3
        %vm831 = vcmp.lt.s32.totalorder %v830, 2
        %vm832 = vcmp.eq.s32.totalorder %v830, 0
        %v833 = vxor.u32 %v827, 2147483648
        %v834 = vsel %vm832, %v826, %v833
        %vm835 = vcmp.eq.s32.totalorder %v830, 2
        %v836 = vxor.u32 %v826, 2147483648
        %v837 = vsel %vm835, %v836, %v827
        %v838 = vsel %vm831, %v834, %v837
        %v839 = vsel %vm828, nan, %v838
        %v840 = vld [vmem:[%s472] sm:$0xff]
        %v841 = vmul.f32 %v840, %v840
        %v843 = vcombine.high %v841, %v841
        %v845 = vsel %vm524, %v841, 0.0
        %v846 = vsel %vm524, %v843, 0.0
        %v847 = vadd.f32 %v845, %v846
        %848 = vadd.xlane.f32.xlu0 %v847
        %v849 = vpop.xlane.xlu0 %848
        %v850 = vsel %vm524, %v849, 0.0
        %v851 = vrot.slane %v850, 4
        %v852 = vadd.f32 %v850, %v851
        %v853 = vrot.slane %v852, 2
        %v854 = vadd.f32 %v852, %v853
        %v855 = vrot.slane %v854, 1
        %v856 = vadd.f32 %v854, %v855
        %v857 = vrsqrt.pop %v856
        %v858 = vmul.f32 %v857, %v629
        %v859 = vmul.f32 %v840, %v858
        %v860 = vmul.f32 %v602, %v735
        %v861 = vmul.f32 %v603, %v735
        %v862 = vmul.f32 %v859, %v839
        %v864 = vcombine.high %v862, %v862
        %v866 = vsub.f32 %v860, %v862
        %v867 = vsub.f32 %v861, %v864
        %v870 = vcombine.low %v866, %v867
        %872 = vst [vmem:[%s487] sm:$0xff] %v870
        %v873 = vmul.f32 %v602, %v839
        %v874 = vmul.f32 %v603, %v839
        %v875 = vmul.f32 %v859, %v735
        %v877 = vcombine.high %v875, %v875
        %v879 = vadd.f32 %v873, %v875
        %v880 = vadd.f32 %v874, %v877
        %v883 = vcombine.low %v879, %v880
        %885 = vst [vmem:[%s492] sm:$0xff] %v883
        %v886 = vld [vmem:[%s477] sm:$0xff]
        %v887 = vmul.f32 %v886, %v886
        %v889 = vcombine.high %v887, %v887
        %v891 = vsel %vm524, %v887, 0.0
        %v892 = vsel %vm524, %v889, 0.0
        %v893 = vadd.f32 %v891, %v892
        %894 = vadd.xlane.f32.xlu0 %v893
        %v895 = vpop.xlane.xlu0 %894
        %v896 = vsel %vm524, %v895, 0.0
        %v897 = vrot.slane %v896, 4
        %v898 = vadd.f32 %v896, %v897
        %v899 = vrot.slane %v898, 2
        %v900 = vadd.f32 %v898, %v899
        %v901 = vrot.slane %v900, 1
        %v902 = vadd.f32 %v900, %v901
        %v903 = vrsqrt.pop %v902
        %v904 = vmul.f32 %v903, %v629
        %v905 = vmul.f32 %v886, %v904
        %s906 = sld [smem:[#allocation4 + %s25]]
        %v907 = vstv %s906
        %v908 = vadd.f32 %v907, 0.0
        %v909 = vand.u32 2147483647, %v908
        %vm910 = vcmp.le.f32.partialorder %v909, 0.7853982
        %vm911 = vcmp.lt.s32.totalorder %v908, 0
        %v912 = vand.u32 %v908, 2139095040
        %v913 = vshrl.u32 %v912, 23
        %v914 = vsub.s32 %v913, 127
        %v915 = vand.u32 2147483647, %v908
        %v916 = vand.u32 %v915, 8388607
        %v917 = vor.u32 %v916, 8388608
        %v918 = vsub.s32 0, %v917
        %v919 = vadd.s32 %v914, 1
        %vm920 = vcmp.gt.s32.totalorder %v919, 0
        %v921 = vsel %vm920, %v919, 0
        %v922 = vshrl.u32 %v921, 5
        %v923 = vand.u32 %v921, 31
        %v924 = vsub.s32 32, %v923
        %v925 = vshrl.u32 683565275, %v924
        %v926 = vshll.u32 683565275, %v923
        %v927 = vshrl.u32 2475754826, %v924
        %v928 = vor.u32 %v926, %v927
        %v929 = vshll.u32 2475754826, %v923
        %v930 = vshrl.u32 2131351028, %v924
        %v931 = vor.u32 %v929, %v930
        %v932 = vshll.u32 2131351028, %v923
        %v933 = vshrl.u32 2102212464, %v924
        %v934 = vor.u32 %v932, %v933
        %v935 = vshll.u32 2102212464, %v923
        %v936 = vshrl.u32 920167782, %v924
        %v937 = vor.u32 %v935, %v936
        %v938 = vshll.u32 920167782, %v923
        %v939 = vshrl.u32 1326507024, %v924
        %v940 = vor.u32 %v938, %v939
        %vm941 = vcmp.lt.s32.totalorder %v922, 1
        %vm942 = vcmp.lt.s32.totalorder %v922, 2
        %vm943 = vcmp.lt.s32.totalorder %v922, 3
        %vm944 = vcmp.lt.s32.totalorder %v922, 4
        %v945 = vsel %vm941, %v925, %v928
        %v946 = vsel %vm944, %v934, 2102212464
        %v947 = vsel %vm943, %v931, %v946
        %v948 = vsel %vm942, %v945, %v947
        %v949 = vsel %vm941, %v928, %v931
        %v950 = vsel %vm944, %v937, 920167782
        %v951 = vsel %vm943, %v934, %v950
        %v952 = vsel %vm942, %v949, %v951
        %v953 = vsel %vm941, %v931, %v934
        %v954 = vsel %vm944, %v940, 1326507024
        %v955 = vsel %vm943, %v937, %v954
        %v956 = vsel %vm942, %v953, %v955
        %v957 = vshll.u32 %v917, 8
        %v958 = vmul.u32.u64.compose %v957, %v956
        %v959 = vextract.low.u32 %v958
        %v960 = vextract.high.u32 %v958
        %v961 = vmul.u32.u64.compose %v957, %v952
        %v962 = vextract.low.u32 %v961
        %v963 = vextract.high.u32 %v961
        %v964 = vmul.u32 %v957, %v948
        %v965 = vadd.s32 %v960, %v962
        %vm966 = vc.u32 %v960, %v962
        %v967 = vadd.s32 %v963, 1
        %v968 = vsel %vm966, %v967, %v963
        %v969 = vadd.s32 %v964, %v968
        %v970 = vadd.s32 %v969, 536870912
        %v971 = vshrl.u32 %v970, 30
        %v972 = vshll.u32 %v971, 30
        %v973 = vsub.s32 %v969, %v972
        %vm974 = vcmp.lt.s32.totalorder %v973, 0
        %v975 = vsub.s32 0, %v973
        %v976 = vsel %vm974, %v975, %v973
        %v977 = vclz %v976
        %v978 = vsub.s32 %v977, 2
        %vm979 = vcmp.gt.s32.totalorder 0, %v978
        %v980 = vsel %vm979, 0, %v978
        %v981 = vsub.s32 32, %v980
        %v982 = vshll.u32 %v973, %v980
        %v983 = vshrl.u32 %v965, %v981
        %v984 = vor.u32 %v982, %v983
        %v985 = vsub.s32 4294967266, %v980
        %v986 = vadd.s32 %v985, 127
        %v987 = vshll.u32 %v986, 23
        %v988 = vor.u32 4788187, %v987
        %v989 = vand.u32 2147483647, %v988
        %v991 = vcvt.s32.f32 %v984
        %v992 = vmul.f32 %v991, %v989
        %v993 = vxor.u32 %v992, 2147483648
        %v994 = vsel %vm911, %v993, %v992
        %v995 = vsub.s32 4, %v971
        %v996 = vsel %vm911, %v995, %v971
        %v997 = vsel %vm910, %v908, %v994
        %v998 = vsel %vm910, 0, %v996
        %v999 = vcosq.f32.pop %v997
        %v1000 = vsinq.f32.pop %v997
        %vm1001 = vweird.f32 %v908
        %v1002 = vand.u32 %v998, 3
        %vm1003 = vcmp.lt.s32.totalorder %v1002, 2
        %vm1004 = vcmp.eq.s32.totalorder %v1002, 0
        %v1005 = vxor.u32 %v1000, 2147483648
        %v1006 = vsel %vm1004, %v999, %v1005
        %vm1007 = vcmp.eq.s32.totalorder %v1002, 2
        %v1008 = vxor.u32 %v999, 2147483648
        %v1009 = vsel %vm1007, %v1008, %v1000
        %v1010 = vsel %vm1003, %v1006, %v1009
        %v1011 = vsel %vm1001, nan, %v1010
        %v1012 = vand.u32 2147483647, %v908
        %vm1013 = vcmp.le.f32.partialorder %v1012, 0.7853982
        %vm1014 = vcmp.lt.s32.totalorder %v908, 0
        %v1015 = vand.u32 %v908, 2139095040
        %v1016 = vshrl.u32 %v1015, 23
        %v1017 = vsub.s32 %v1016, 127
        %v1018 = vand.u32 2147483647, %v908
        %v1019 = vand.u32 %v1018, 8388607
        %v1020 = vor.u32 %v1019, 8388608
        %v1021 = vsub.s32 0, %v1020
        %v1022 = vadd.s32 %v1017, 1
        %vm1023 = vcmp.gt.s32.totalorder %v1022, 0
        %v1024 = vsel %vm1023, %v1022, 0
        %v1025 = vshrl.u32 %v1024, 5
        %v1026 = vand.u32 %v1024, 31
        %v1027 = vsub.s32 32, %v1026
        %v1028 = vshrl.u32 683565275, %v1027
        %v1029 = vshll.u32 683565275, %v1026
        %v1030 = vshrl.u32 2475754826, %v1027
        %v1031 = vor.u32 %v1029, %v1030
        %v1032 = vshll.u32 2475754826, %v1026
        %v1033 = vshrl.u32 2131351028, %v1027
        %v1034 = vor.u32 %v1032, %v1033
        %v1035 = vshll.u32 2131351028, %v1026
        %v1036 = vshrl.u32 2102212464, %v1027
        %v1037 = vor.u32 %v1035, %v1036
        %v1038 = vshll.u32 2102212464, %v1026
        %v1039 = vshrl.u32 920167782, %v1027
        %v1040 = vor.u32 %v1038, %v1039
        %v1041 = vshll.u32 920167782, %v1026
        %v1042 = vshrl.u32 1326507024, %v1027
        %v1043 = vor.u32 %v1041, %v1042
        %vm1044 = vcmp.lt.s32.totalorder %v1025, 1
        %vm1045 = vcmp.lt.s32.totalorder %v1025, 2
        %vm1046 = vcmp.lt.s32.totalorder %v1025, 3
        %vm1047 = vcmp.lt.s32.totalorder %v1025, 4
        %v1048 = vsel %vm1044, %v1028, %v1031
        %v1049 = vsel %vm1047, %v1037, 2102212464
        %v1050 = vsel %vm1046, %v1034, %v1049
        %v1051 = vsel %vm1045, %v1048, %v1050
        %v1052 = vsel %vm1044, %v1031, %v1034
        %v1053 = vsel %vm1047, %v1040, 920167782
        %v1054 = vsel %vm1046, %v1037, %v1053
        %v1055 = vsel %vm1045, %v1052, %v1054
        %v1056 = vsel %vm1044, %v1034, %v1037
        %v1057 = vsel %vm1047, %v1043, 1326507024
        %v1058 = vsel %vm1046, %v1040, %v1057
        %v1059 = vsel %vm1045, %v1056, %v1058
        %v1060 = vshll.u32 %v1020, 8
        %v1061 = vmul.u32.u64.compose %v1060, %v1059
        %v1062 = vextract.low.u32 %v1061
        %v1063 = vextract.high.u32 %v1061
        %v1064 = vmul.u32.u64.compose %v1060, %v1055
        %v1065 = vextract.low.u32 %v1064
        %v1066 = vextract.high.u32 %v1064
        %v1067 = vmul.u32 %v1060, %v1051
        %v1068 = vadd.s32 %v1063, %v1065
        %vm1069 = vc.u32 %v1063, %v1065
        %v1070 = vadd.s32 %v1066, 1
        %v1071 = vsel %vm1069, %v1070, %v1066
        %v1072 = vadd.s32 %v1067, %v1071
        %v1073 = vadd.s32 %v1072, 536870912
        %v1074 = vshrl.u32 %v1073, 30
        %v1075 = vshll.u32 %v1074, 30
        %v1076 = vsub.s32 %v1072, %v1075
        %vm1077 = vcmp.lt.s32.totalorder %v1076, 0
        %v1078 = vsub.s32 0, %v1076
        %v1079 = vsel %vm1077, %v1078, %v1076
        %v1080 = vclz %v1079
        %v1081 = vsub.s32 %v1080, 2
        %vm1082 = vcmp.gt.s32.totalorder 0, %v1081
        %v1083 = vsel %vm1082, 0, %v1081
        %v1084 = vsub.s32 32, %v1083
        %v1085 = vshll.u32 %v1076, %v1083
        %v1086 = vshrl.u32 %v1068, %v1084
        %v1087 = vor.u32 %v1085, %v1086
        %v1088 = vsub.s32 4294967266, %v1083
        %v1089 = vadd.s32 %v1088, 127
        %v1090 = vshll.u32 %v1089, 23
        %v1091 = vor.u32 4788187, %v1090
        %v1092 = vand.u32 2147483647, %v1091
        %v1094 = vcvt.s32.f32 %v1087
        %v1095 = vmul.f32 %v1094, %v1092
        %v1096 = vxor.u32 %v1095, 2147483648
        %v1097 = vsel %vm1014, %v1096, %v1095
        %v1098 = vsub.s32 4, %v1074
        %v1099 = vsel %vm1014, %v1098, %v1074
        %v1100 = vsel %vm1013, %v908, %v1097
        %v1101 = vsel %vm1013, 0, %v1099
        %v1102 = vcosq.f32.pop %v1100
        %v1103 = vsinq.f32.pop %v1100
        %vm1104 = vweird.f32 %v908
        %v1105 = vadd.s32 %v1101, 3
        %v1106 = vand.u32 %v1105, 3
        %vm1107 = vcmp.lt.s32.totalorder %v1106, 2
        %vm1108 = vcmp.eq.s32.totalorder %v1106, 0
        %v1109 = vxor.u32 %v1103, 2147483648
        %v1110 = vsel %vm1108, %v1102, %v1109
        %vm1111 = vcmp.eq.s32.totalorder %v1106, 2
        %v1112 = vxor.u32 %v1102, 2147483648
        %v1113 = vsel %vm1111, %v1112, %v1103
        %v1114 = vsel %vm1107, %v1110, %v1113
        %v1115 = vsel %vm1104, nan, %v1114
        %v1116 = vmul.f32 %v602, %v1011
        %v1117 = vmul.f32 %v603, %v1011
        %v1118 = vmul.f32 %v905, %v1115
        %v1120 = vcombine.high %v1118, %v1118
        %v1122 = vsub.f32 %v1116, %v1118
        %v1123 = vsub.f32 %v1117, %v1120
        %v1126 = vcombine.low %v1122, %v1123
        %1128 = vst [vmem:[%s497] sm:$0xff] %v1126
        %v1129 = vmul.f32 %v602, %v1115
        %v1130 = vmul.f32 %v603, %v1115
        %v1131 = vmul.f32 %v905, %v1011
        %v1133 = vcombine.high %v1131, %v1131
        %v1135 = vadd.f32 %v1129, %v1131
        %v1136 = vadd.f32 %v1130, %v1133
        %v1139 = vcombine.low %v1135, %v1136
        %1141 = vst [vmem:[%s502] sm:$0xff] %v1139
        %p1142 = scmp.lt.s32.totalorder %s25, 1
        %s1143 = scalar_select %p1142, %s25, 1
        %s1144 = smul.addr %s1143, 2
        %s1145 = smul.addr %s1144, 4
        %s1146 = scalar_lea.vmem %s7, %s1145
        %p1147 = scmp.lt.s32.totalorder %s25, 1
        %s1148 = scalar_select %p1147, %s25, 1
        %s1149 = smul.addr %s1148, 2
        %s1150 = smul.addr %s1149, 4
        %s1151 = scalar_lea.vmem %s8, %s1150
        %p1152 = scmp.lt.s32.totalorder %s25, 1
        %s1153 = scalar_select %p1152, %s25, 1
        %s1154 = smul.addr %s1153, 2
        %s1155 = smul.addr %s1154, 4
        %s1156 = scalar_lea.vmem %s9, %s1155
        %p1157 = scmp.lt.s32.totalorder %s25, 1
        %s1158 = scalar_select %p1157, %s25, 1
        %s1159 = smul.addr %s1158, 2
        %s1160 = smul.addr %s1159, 4
        %s1161 = scalar_lea.vmem %s10, %s1160
        %p1162 = scmp.lt.s32.totalorder %s25, 1
        %s1163 = scalar_select %p1162, %s25, 1
        %s1164 = smul.addr %s1163, 2
        %s1165 = smul.addr %s1164, 4
        %s1166 = scalar_lea.vmem %s11, %s1165
        // Predicated region
        $region57: #{generator_forward.3} parent=47 // pred_check
          %p1167 = pneg %p205
        $region58: #{generator_forward.3} parent=47 // pred_check_branch
          %1169 = sbr.rel (%p1167) target = $region60
        $region59: #{generator_forward.3} parent=47 // pred_region
          _
        $region60: #{generator_forward.3} parent=47 // pred_fallthru
          _
        // Predicated region
        $region61: #{generator_forward.3} parent=47 // pred_check
          %p1170 = pneg %p231
        $region62: #{generator_forward.3} parent=47 // pred_check_branch
          %1172 = sbr.rel (%p1170) target = $region64
        $region63: #{generator_forward.3} parent=47 // pred_region
          _
        $region64: #{generator_forward.3} parent=47 // pred_fallthru
          _
        // Predicated region
        $region65: #{generator_forward.3} parent=47 // pred_check
          %p1173 = pneg %p257
        $region66: #{generator_forward.3} parent=47 // pred_check_branch
          %1175 = sbr.rel (%p1173) target = $region68
        $region67: #{generator_forward.3} parent=47 // pred_region
          _
        $region68: #{generator_forward.3} parent=47 // pred_fallthru
          _
        // Predicated region
        $region69: #{generator_forward.3} parent=47 // pred_check
          %p1176 = pneg %p283
        $region70: #{generator_forward.3} parent=47 // pred_check_branch
          %1178 = sbr.rel (%p1176) target = $region72
        $region71: #{generator_forward.3} parent=47 // pred_region
          _
        $region72: #{generator_forward.3} parent=47 // pred_fallthru
          _
        // Predicated region
        $region73: #{generator_forward.3} parent=47 // pred_check
          %p1179 = pneg %p309
        $region74: #{generator_forward.3} parent=47 // pred_check_branch
          %1181 = sbr.rel (%p1179) target = $region76
        $region75: #{generator_forward.3} parent=47 // pred_region
          _
        $region76: #{generator_forward.3} parent=47 // pred_fallthru
          _
      $region48: #{generator_forward.3} parent=5 // pred_fallthru
        _
      %p1182 = scmp.le.s32.totalorder 2, %s20
      // Predicated region
      $region77: #{generator_forward.3} parent=5 // pred_check
        %p1183 = pneg %p1182
      $region78: #{generator_forward.3} parent=5 // pred_check_branch
        %1185 = sbr.rel (%p1183) target = $region80
      $region79: #{generator_forward.3} parent=5 // pred_region
        %s1186 = ssub.s32 %s20, 2
        // Predicated region
        $region81: #{generator_forward.3} parent=79 // pred_check
          %p1187 = pneg %p211
        $region82: #{generator_forward.3} parent=79 // pred_check_branch
          %1189 = sbr.rel (%p1187) target = $region84
        $region83: #{generator_forward.3} parent=79 // pred_region
          %p1190 = scmp.lt.s32.totalorder %s26, 1
          %s1191 = scalar_select %p1190, %s26, 1
          %s1192 = smul.addr %s1191, 2
          %s1193 = smul.addr %s1192, 4
          %s1194 = scalar_lea.vmem %s7, %s1193
        $region84: #{generator_forward.3} parent=79 // pred_fallthru
          _
        // Predicated region
        $region85: #{generator_forward.3} parent=79 // pred_check
          %p1195 = pneg %p237
        $region86: #{generator_forward.3} parent=79 // pred_check_branch
          %1197 = sbr.rel (%p1195) target = $region88
        $region87: #{generator_forward.3} parent=79 // pred_region
          %p1198 = scmp.lt.s32.totalorder %s26, 1
          %s1199 = scalar_select %p1198, %s26, 1
          %s1200 = smul.addr %s1199, 2
          %s1201 = smul.addr %s1200, 4
          %s1202 = scalar_lea.vmem %s8, %s1201
        $region88: #{generator_forward.3} parent=79 // pred_fallthru
          _
        // Predicated region
        $region89: #{generator_forward.3} parent=79 // pred_check
          %p1203 = pneg %p263
        $region90: #{generator_forward.3} parent=79 // pred_check_branch
          %1205 = sbr.rel (%p1203) target = $region92
        $region91: #{generator_forward.3} parent=79 // pred_region
          %p1206 = scmp.lt.s32.totalorder %s26, 1
          %s1207 = scalar_select %p1206, %s26, 1
          %s1208 = smul.addr %s1207, 2
          %s1209 = smul.addr %s1208, 4
          %s1210 = scalar_lea.vmem %s9, %s1209
        $region92: #{generator_forward.3} parent=79 // pred_fallthru
          _
        // Predicated region
        $region93: #{generator_forward.3} parent=79 // pred_check
          %p1211 = pneg %p289
        $region94: #{generator_forward.3} parent=79 // pred_check_branch
          %1213 = sbr.rel (%p1211) target = $region96
        $region95: #{generator_forward.3} parent=79 // pred_region
          %p1214 = scmp.lt.s32.totalorder %s26, 1
          %s1215 = scalar_select %p1214, %s26, 1
          %s1216 = smul.addr %s1215, 2
          %s1217 = smul.addr %s1216, 4
          %s1218 = scalar_lea.vmem %s10, %s1217
        $region96: #{generator_forward.3} parent=79 // pred_fallthru
          _
        // Predicated region
        $region97: #{generator_forward.3} parent=79 // pred_check
          %p1219 = pneg %p315
        $region98: #{generator_forward.3} parent=79 // pred_check_branch
          %1221 = sbr.rel (%p1219) target = $region100
        $region99: #{generator_forward.3} parent=79 // pred_region
          %p1222 = scmp.lt.s32.totalorder %s26, 1
          %s1223 = scalar_select %p1222, %s26, 1
          %s1224 = smul.addr %s1223, 2
          %s1225 = smul.addr %s1224, 4
          %s1226 = scalar_lea.vmem %s11, %s1225
        $region100: #{generator_forward.3} parent=79 // pred_fallthru
          _
      $region80: #{generator_forward.3} parent=5 // pred_fallthru
        _
    $region6: #{generator_forward.3} parent=1 // loop_footer
      %s24 = sadd.s32 1, %s20
    $region7: #{generator_forward.3} parent=1 // loop_footer_branch
      %19 = sbr.rel target = $region3
    $region8: #{generator_forward.3} parent=1 // loop_exit
      _
    %1227 = vsyncpa [#allocation3], 1
    %s1228 = scalar_lea.sflag [#allocation3], 1
    %1229 = vsyncpa %s1228, 1
    %1230 = vsyncpa [#allocation5], 1

</llo_original>
